<compile_context>
chip_gen: v7x
topology: tpu7x:2x2x1
jax: 0.10.0
libtpu: 0.0.40
codegen_flags: <defaults>
</compile_context>

<pallas_src>
import functools
import itertools

import numpy as np
import jax
import jax.numpy as jnp
from jax.experimental import pallas as pl
from jax.experimental.pallas import tpu as pltpu

LAMBDA_CLS = 2.0
LAMBDA_BBOX = 0.25
ALPHA = 0.25
GAMMA = 2.0  # kernel is specialised to gamma == 2 (pow -> VPU squares)


def _round_up(x, m):
    return (x + m - 1) // m * m


# ----------------------------- Pallas kernel ---------------------------------
def _focal_diff(x):
    """pos_cost - neg_cost of the focal class cost, directly from logits (gamma == 2).

    softplus(-x) = -log(sigmoid(x)), softplus(x) = -log(1 - sigmoid(x)).
    sigmoid(x) via 1/(1+e) with an approx reciprocal (EUP-free) — breaks the serial
    exp -> log -> exp chain on the single EUP slot.
    """
    e = jnp.exp(-jnp.abs(x))
    sp_neg = jnp.maximum(-x, 0.0) + jnp.log1p(e)                          # softplus(-x)
    sp_pos = sp_neg + x                                                   # softplus(x)
    p = jnp.where(x >= 0, 1.0, e) * pl.reciprocal(1.0 + e, approx=True)   # sigmoid(x)
    one_m_p = 1.0 - p
    pos = ALPHA * (one_m_p * one_m_p) * sp_neg
    neg = (1.0 - ALPHA) * (p * p) * sp_pos
    return pos - neg


def _matcher_cost_kernel(logits_ref, pboxes_ref, onehot_t_ref, gboxes_t_ref,
                         c_ref, *, gather_first):
    # logits_ref:   (TM, C)     flattened pred_logits tile (class axis unpadded)
    # pboxes_ref:   (TM, 4)     flattened pred_boxes tile
    # onehot_t_ref: (C, Gpad)   one_hot(gt_labels).T (zero cols in padding)
    # gboxes_t_ref: (4, Gpad)   gt_boxes.T           (zero cols in padding)
    # c_ref:        (TM, Gpad)  fused LAMBDA_CLS*cost_class + LAMBDA_BBOX*cost_bbox
    if gather_first:
        # Gpad < C: gather the relevant logits first (MXU), focal math on (TM, Gpad).
        xg = jnp.dot(logits_ref[...], onehot_t_ref[...],
                     preferred_element_type=jnp.float32)
        cc = _focal_diff(xg)
    else:
        # C <= Gpad: focal math on (TM, C), then the one-hot gather on the MXU.
        diff = _focal_diff(logits_ref[...])
        cc = jnp.dot(diff, onehot_t_ref[...], preferred_element_type=jnp.float32)

    # cdist p=2 as a direct 4-term sum of squared differences (VPU broadcast MACs):
    # no cancellation for nearly-identical boxes and no under-filled K=4 MXU matmul.
    pb = pboxes_ref[...]                                   # (TM, 4)
    gbt = gboxes_t_ref[...]                                # (4, Gpad)
    d0 = pb[:, 0:1] - gbt[0:1, :]
    d1 = pb[:, 1:2] - gbt[1:2, :]
    d2 = pb[:, 2:3] - gbt[2:3, :]
    d3 = pb[:, 3:4] - gbt[3:4, :]
    cb = jnp.sqrt(d0 * d0 + d1 * d1 + d2 * d2 + d3 * d3)

    c_ref[...] = LAMBDA_CLS * cc + LAMBDA_BBOX * cb


def compute_total_cost(pred_logits, pred_boxes, gt_labels, gt_boxes):
    """Runs the fused Pallas kernel.

    Returns (c, cropped): `c` is the weighted total cost matrix; if `cropped` is True it
    is already (M, G), otherwise it is the padded (Mpad, Gpad) array (crop on host).
    """
    B, N, C = pred_logits.shape
    M = B * N
    G = int(gt_boxes.shape[0])

    # Lane-dense output: G padded to a multiple of 128.  Row axis padded to the M tile.
    Gpad = _round_up(max(G, 1), 128)
    TM = min(1024, _round_up(M, 8))
    # Keep >= 2 grid steps when possible so dimension_semantics=("parallel",) can shard
    # the row tiles across both TensorCores on v7x (harmless on single-TC v5e/v6e).
    if _round_up(M, TM) // TM < 2 and TM > 8:
        TM = _round_up((M + 1) // 2, 8)
    Mpad = _round_up(M, TM)

    logits2d = jnp.pad(pred_logits.reshape(M, C).astype(jnp.float32),
                       ((0, Mpad - M), (0, 0)))
    boxes2d = jnp.pad(pred_boxes.reshape(M, 4).astype(jnp.float32),
                      ((0, Mpad - M), (0, 0)))
    onehot_t = jnp.pad(jax.nn.one_hot(gt_labels, C, dtype=jnp.float32).T,
                       ((0, 0), (0, Gpad - G)))
    gboxes_t = jnp.pad(gt_boxes.astype(jnp.float32).T,
                       ((0, 0), (0, Gpad - G)))

    # Scoped-VMEM budget: only override the 32 MiB default when the double-buffered
    # working set actually needs it; cap at v7x's 64 MiB physical VMEM.
    vmem_bytes = 4 * (2 * TM * (C + 4 + Gpad) + C * Gpad + 4 * Gpad) + (2 << 20)
    vmem_limit = min(vmem_bytes, 64 << 20) if vmem_bytes > (32 << 20) else None

    c_full = pl.pallas_call(
        functools.partial(_matcher_cost_kernel, gather_first=Gpad < C),
        out_shape=jax.ShapeDtypeStruct((Mpad, Gpad), jnp.float32),
        grid=(Mpad // TM,),
        in_specs=[
            pl.BlockSpec((TM, C), lambda i: (i, 0)),       # logits tile (full class axis)
            pl.BlockSpec((TM, 4), lambda i: (i, 0)),       # boxes tile
            pl.BlockSpec((C, Gpad), lambda i: (0, 0)),     # one-hot (resident)
            pl.BlockSpec((4, Gpad), lambda i: (0, 0)),     # gt boxes (resident)
        ],
        out_specs=pl.BlockSpec((TM, Gpad), lambda i: (i, 0)),
        compiler_params=pltpu.CompilerParams(
            dimension_semantics=("parallel",),
            vmem_limit_bytes=vmem_limit),
    )(logits2d, boxes2d, onehot_t, gboxes_t)

    # Device-side crop only when padding dominates (shrinks the device->host transfer a
    # lot for tiny G); otherwise skip the extra HBM round trip and crop on the host.
    if Mpad * Gpad > 2 * M * max(G, 1):
        return c_full[:M, :G], True
    return c_full, False


# -------------------------- host-side assignment ------------------------------
def _linear_sum_assignment_bruteforce(cost):
    """Exact rectangular assignment (n_rows >= n_cols) for small demo sizes."""
    cost = np.asarray(cost)
    n_rows, n_cols = cost.shape
    best_perm, best_val = None, None
    for perm in itertools.permutations(range(n_rows), n_cols):
        val = sum(cost[perm[j], j] for j in range(n_cols))
        if best_val is None or val < best_val:
            best_val, best_perm = val, perm
    pairs = sorted(zip(best_perm, range(n_cols)))
    rows = np.array([r for r, _ in pairs], dtype=np.int64)
    cols = np.array([c for _, c in pairs], dtype=np.int64)
    return rows, cols


def hungarian_matcher(preds, tgts):
    pred_logits = preds['pred_logits']
    pred_boxes = preds['pred_boxes']
    B, N_query, _ = pred_logits.shape

    gt_labels = jnp.concatenate([t['labels'] for t in tgts])
    gt_boxes = jnp.concatenate([t['gt_boxes'] for t in tgts])

    c_dev, cropped = compute_total_cost(pred_logits, pred_boxes, gt_labels, gt_boxes)
    jax.block_until_ready(c_dev)

    M = B * N_query
    G = int(gt_boxes.shape[0])
    C = np.asarray(c_dev)
    if not cropped:
        C = C[:M, :G]
    C = C.reshape(B, N_query, G)

    sizes = [int(t['gt_boxes'].shape[0]) for t in tgts]
    offsets = np.cumsum([0] + sizes)

    indices = []
    for b in range(B):
        c_b = C[b, :, offsets[b]:offsets[b + 1]]
        indices.append(_linear_sum_assignment_bruteforce(c_b))

    # matcher_cost_cls / matcher_cost_box only need the matched entries, so they are
    # re-evaluated on the host (<= sum(sizes) scalars per batch) instead of having the
    # kernel store two extra dense (M, Gpad) f32 arrays.
    logits_np = np.asarray(pred_logits, dtype=np.float64)
    boxes_np = np.asarray(pred_boxes, dtype=np.float64)
    glabels_np = np.asarray(gt_labels)
    gboxes_np = np.asarray(gt_boxes, dtype=np.float64)

    cls_vals, box_vals = [], []
    for b in range(B):
        i, j = indices[b]
        jj = offsets[b] + j
        x = logits_np[b, i, glabels_np[jj]]
        p = 1.0 / (1.0 + np.exp(-x))
        neg = (1.0 - ALPHA) * p ** GAMMA * -np.log(1.0 - p + 1e-8)
        pos = ALPHA * (1.0 - p) ** GAMMA * -np.log(p + 1e-8)
        cls_vals.append(np.mean(pos - neg))
        box_vals.append(np.mean(np.linalg.norm(boxes_np[b, i] - gboxes_np[jj], axis=-1)))

    out_ind = [(i.astype(np.int64), j.astype(np.int64)) for i, j in indices]
    cost_tags = {
        'matcher_cost_cls': np.float32(np.mean(cls_vals)),
        'matcher_cost_box': np.float32(np.mean(box_vals)),
    }
    return out_ind, cost_tags


# ----------------------------------- main -------------------------------------
if __name__ == "__main__":
    key = jax.random.PRNGKey(0)
    B, N_query, num_classes = 2, 8, 32
    sizes = [3, 4]

    k1, k2, k3, k4 = jax.random.split(key, 4)
    preds = {
        'pred_logits': jax.random.normal(k1, (B, N_query, num_classes), jnp.float32),
        'pred_boxes': jax.random.uniform(k2, (B, N_query, 4), dtype=jnp.float32),
    }
    lab_keys = jax.random.split(k3, B)
    box_keys = jax.random.split(k4, B)
    tgts = []
    for b in range(B):
        tgts.append({
            'labels': jax.random.randint(lab_keys[b], (sizes[b],), 0, num_classes),
            'gt_boxes': jax.random.uniform(box_keys[b], (sizes[b], 4), dtype=jnp.float32),
        })

    out_ind, cost_tags = hungarian_matcher(preds, tgts)
    # touch results to ensure everything is materialized
    _ = [np.asarray(i).sum() + np.asarray(j).sum() for i, j in out_ind]
    _ = float(cost_tags['matcher_cost_cls']) + float(cost_tags['matcher_cost_box'])
    print("KERNEL_OK")
</pallas_src>

<mosaic_0001>
module attributes {stable_mosaic.version = 11 : i64} {
  func.func @_matcher_cost_kernel(%arg0: i32, %arg1: memref<8x32xf32, #tpu.memory_space<vmem>>, %arg2: memref<8x4xf32, #tpu.memory_space<vmem>>, %arg3: memref<32x128xf32, #tpu.memory_space<vmem>>, %arg4: memref<4x128xf32, #tpu.memory_space<vmem>>, %arg5: memref<8x128xf32, #tpu.memory_space<vmem>>) attributes {dimension_semantics = [#tpu.dimension_semantics<parallel>], iteration_bounds = array<i64: 2>, scalar_prefetch = 0 : i64, scratch_operands = 0 : i64, tpu.core_type = #tpu.core_type<tc>, window_params = [{transform_indices = @transform_0, window_bounds = array<i64: 8, 32>}, {transform_indices = @transform_1, window_bounds = array<i64: 8, 4>}, {pipeline_mode = #tpu.pipeline_mode<synchronous>, transform_indices = @transform_2, window_bounds = array<i64: 32, 128>}, {pipeline_mode = #tpu.pipeline_mode<synchronous>, transform_indices = @transform_3, window_bounds = array<i64: 4, 128>}, {transform_indices = @transform_4, window_bounds = array<i64: 8, 128>}]} {
    %c0 = arith.constant 0 : index
    %c0_0 = arith.constant 0 : index
    %0 = vector.load %arg1[%c0, %c0_0] : memref<8x32xf32, #tpu.memory_space<vmem>>, vector<8x32xf32>
    %1 = math.absf %0 : vector<8x32xf32>
    %cst = arith.constant 0.000000e+00 : f32
    %2 = vector.broadcast %cst : f32 to vector<8x32xf32>
    %3 = arith.subf %2, %1 : vector<8x32xf32>
    %4 = math.exp %3 : vector<8x32xf32>
    %cst_1 = arith.constant 0.000000e+00 : f32
    %5 = vector.broadcast %cst_1 : f32 to vector<8x32xf32>
    %6 = arith.subf %5, %0 : vector<8x32xf32>
    %cst_2 = arith.constant 0.000000e+00 : f32
    %7 = vector.broadcast %cst_2 : f32 to vector<8x32xf32>
    %8 = arith.maximumf %6, %7 : vector<8x32xf32>
    %9 = math.log1p %4 : vector<8x32xf32>
    %10 = arith.addf %8, %9 : vector<8x32xf32>
    %11 = arith.addf %10, %0 : vector<8x32xf32>
    %cst_3 = arith.constant 0.000000e+00 : f32
    %12 = vector.broadcast %cst_3 : f32 to vector<8x32xf32>
    %13 = arith.cmpf oge, %0, %12 : vector<8x32xf32>
    %cst_4 = arith.constant 1.000000e+00 : f32
    %14 = vector.broadcast %cst_4 : f32 to vector<8x32xf32>
    %15 = arith.select %13, %14, %4 : vector<8x32xi1>, vector<8x32xf32>
    %cst_5 = arith.constant 1.000000e+00 : f32
    %16 = vector.broadcast %cst_5 : f32 to vector<8x32xf32>
    %17 = arith.addf %16, %4 : vector<8x32xf32>
    %18 = tpu.reciprocal %17 {approx = true} : vector<8x32xf32> -> vector<8x32xf32>
    %19 = arith.mulf %15, %18 : vector<8x32xf32>
    %cst_6 = arith.constant 1.000000e+00 : f32
    %20 = vector.broadcast %cst_6 : f32 to vector<8x32xf32>
    %21 = arith.subf %20, %19 : vector<8x32xf32>
    %22 = arith.mulf %21, %21 : vector<8x32xf32>
    %cst_7 = arith.constant 2.500000e-01 : f32
    %23 = vector.broadcast %cst_7 : f32 to vector<8x32xf32>
    %24 = arith.mulf %23, %22 : vector<8x32xf32>
    %25 = arith.mulf %24, %10 : vector<8x32xf32>
    %26 = arith.mulf %19, %19 : vector<8x32xf32>
    %cst_8 = arith.constant 7.500000e-01 : f32
    %27 = vector.broadcast %cst_8 : f32 to vector<8x32xf32>
    %28 = arith.mulf %27, %26 : vector<8x32xf32>
    %29 = arith.mulf %28, %11 : vector<8x32xf32>
    %30 = arith.subf %25, %29 : vector<8x32xf32>
    %c0_9 = arith.constant 0 : index
    %c0_10 = arith.constant 0 : index
    %31 = vector.load %arg3[%c0_9, %c0_10] : memref<32x128xf32, #tpu.memory_space<vmem>>, vector<32x128xf32>
    %cst_11 = arith.constant dense<0.000000e+00> : vector<8x128xf32>
    %32 = tpu.matmul %30, %31, %cst_11 {dimension_numbers = #tpu.dot_dimension_numbers<[1], [0], [0], [1], [0, 0, 1, 1], [], []>} : vector<8x32xf32>, vector<32x128xf32>, vector<8x128xf32> -> vector<8x128xf32>
    %c0_12 = arith.constant 0 : index
    %c0_13 = arith.constant 0 : index
    %33 = vector.load %arg2[%c0_12, %c0_13] : memref<8x4xf32, #tpu.memory_space<vmem>>, vector<8x4xf32>
    %c0_14 = arith.constant 0 : index
    %c0_15 = arith.constant 0 : index
    %34 = vector.load %arg4[%c0_14, %c0_15] : memref<4x128xf32, #tpu.memory_space<vmem>>, vector<4x128xf32>
    %35 = vector.extract_strided_slice %33 {offsets = [0, 0], sizes = [8, 1], strides = [1, 1]} : vector<8x4xf32> to vector<8x1xf32>
    %36 = vector.extract_strided_slice %34 {offsets = [0, 0], sizes = [1, 128], strides = [1, 1]} : vector<4x128xf32> to vector<1x128xf32>
    %37 = vector.broadcast %35 : vector<8x1xf32> to vector<8x128xf32>
    %38 = vector.broadcast %36 : vector<1x128xf32> to vector<8x128xf32>
    %39 = arith.subf %37, %38 : vector<8x128xf32>
    %40 = vector.extract_strided_slice %33 {offsets = [0, 1], sizes = [8, 1], strides = [1, 1]} : vector<8x4xf32> to vector<8x1xf32>
    %41 = vector.extract_strided_slice %34 {offsets = [1, 0], sizes = [1, 128], strides = [1, 1]} : vector<4x128xf32> to vector<1x128xf32>
    %42 = vector.broadcast %40 : vector<8x1xf32> to vector<8x128xf32>
    %43 = vector.broadcast %41 : vector<1x128xf32> to vector<8x128xf32>
    %44 = arith.subf %42, %43 : vector<8x128xf32>
    %45 = vector.extract_strided_slice %33 {offsets = [0, 2], sizes = [8, 1], strides = [1, 1]} : vector<8x4xf32> to vector<8x1xf32>
    %46 = vector.extract_strided_slice %34 {offsets = [2, 0], sizes = [1, 128], strides = [1, 1]} : vector<4x128xf32> to vector<1x128xf32>
    %47 = vector.broadcast %45 : vector<8x1xf32> to vector<8x128xf32>
    %48 = vector.broadcast %46 : vector<1x128xf32> to vector<8x128xf32>
    %49 = arith.subf %47, %48 : vector<8x128xf32>
    %50 = vector.extract_strided_slice %33 {offsets = [0, 3], sizes = [8, 1], strides = [1, 1]} : vector<8x4xf32> to vector<8x1xf32>
    %51 = vector.extract_strided_slice %34 {offsets = [3, 0], sizes = [1, 128], strides = [1, 1]} : vector<4x128xf32> to vector<1x128xf32>
    %52 = vector.broadcast %50 : vector<8x1xf32> to vector<8x128xf32>
    %53 = vector.broadcast %51 : vector<1x128xf32> to vector<8x128xf32>
    %54 = arith.subf %52, %53 : vector<8x128xf32>
    %55 = arith.mulf %39, %39 : vector<8x128xf32>
    %56 = arith.mulf %44, %44 : vector<8x128xf32>
    %57 = arith.addf %55, %56 : vector<8x128xf32>
    %58 = arith.mulf %49, %49 : vector<8x128xf32>
    %59 = arith.addf %57, %58 : vector<8x128xf32>
    %60 = arith.mulf %54, %54 : vector<8x128xf32>
    %61 = arith.addf %59, %60 : vector<8x128xf32>
    %62 = math.sqrt %61 : vector<8x128xf32>
    %cst_16 = arith.constant 2.000000e+00 : f32
    %63 = vector.broadcast %cst_16 : f32 to vector<8x128xf32>
    %64 = arith.mulf %63, %32 : vector<8x128xf32>
    %cst_17 = arith.constant 2.500000e-01 : f32
    %65 = vector.broadcast %cst_17 : f32 to vector<8x128xf32>
    %66 = arith.mulf %65, %62 : vector<8x128xf32>
    %67 = arith.addf %64, %66 : vector<8x128xf32>
    %c0_18 = arith.constant 0 : index
    %c0_19 = arith.constant 0 : index
    %68 = vector.load %arg5[%c0_18, %c0_19] : memref<8x128xf32, #tpu.memory_space<vmem>>, vector<8x128xf32>
    tpu.vector_store %arg5[%c0_18, %c0_19], %67 {strides = array<i32>} : memref<8x128xf32, #tpu.memory_space<vmem>>, vector<8x128xf32>,
    return
  }
  func.func @transform_0(%arg0: i32) -> (i32, i32) {
    %c0_i32 = arith.constant 0 : i32
    %c0_i32_0 = arith.constant 0 : i32
    return %arg0, %c0_i32 : i32, i32
  }
  func.func @transform_1(%arg0: i32) -> (i32, i32) {
    %c0_i32 = arith.constant 0 : i32
    %c0_i32_0 = arith.constant 0 : i32
    return %arg0, %c0_i32 : i32, i32
  }
  func.func @transform_2(%arg0: i32) -> (i32, i32) {
    %c0_i32 = arith.constant 0 : i32
    %c0_i32_0 = arith.constant 0 : i32
    %c0_i32_1 = arith.constant 0 : i32
    return %c0_i32, %c0_i32_0 : i32, i32
  }
  func.func @transform_3(%arg0: i32) -> (i32, i32) {
    %c0_i32 = arith.constant 0 : i32
    %c0_i32_0 = arith.constant 0 : i32
    %c0_i32_1 = arith.constant 0 : i32
    return %c0_i32, %c0_i32_0 : i32, i32
  }
  func.func @transform_4(%arg0: i32) -> (i32, i32) {
    %c0_i32 = arith.constant 0 : i32
    %c0_i32_0 = arith.constant 0 : i32
    return %arg0, %c0_i32 : i32, i32
  }
}

</mosaic_0001>

<llo_original>
// kernel: tpu_custom_call.1
$region0: #{tpu_custom_call.1}
  #allocation0 [shape = 'u32[]', space=smem, size = 0x4, offset = 0x4, fixed_abs, tag = 'smem constant byte address 0x4 - core index']
  #allocation1 [shape = 'u32[144,128]{1,0:T(1,128)}', space=vmem, size = 0x12000, scoped, tag = 'internal scratch']
  %s0 = inlined_call_operand.vmem [shape: f32[16,32], index: 0, kind: input, shape index: {}]
  %s1 = inlined_call_operand.vmem [shape: f32[16,4], index: 1, kind: input, shape index: {}]
  %s2 = inlined_call_operand.hbm [shape: f32[32,128], index: 2, kind: input, shape index: {}]
  %s3 = inlined_call_operand.vmem [shape: f32[4,128], index: 3, kind: input, shape index: {}]
  %s4 = inlined_call_operand.hbm [shape: f32[16,128], index: 4, kind: output, shape index: {}]
  %s5 = sld [smem:[#allocation0]]
  $region53: #{tpu_custom_call.1} parent=0
    _
  %s7 = ssub.s32 1, %s5
  %s8 = scalar_select 0, %s7, %s5
  $region1: #{tpu_custom_call.1} parent=0
    #allocation2 [shape = 'u8[16384]{0}', space=vmem, size = 0x4000, scoped, tag = 'input window, operand 2, single buffered']
    #allocation3 [shape = 's32[2]{0}', space=sflag, size = 0x8, scoped, tag = 'scoped memory for tpu_custom_call.1']
    #allocation4 [shape = 's32[2]{0}', space=sflag, size = 0x8, scoped, tag = 'scoped memory for tpu_custom_call.1']
    #allocation5 [shape = 'u8[8192]{0}', space=vmem, size = 0x2000, scoped, tag = 'output window, operand 0']
    %9 = vsyncpa [#allocation3], 0
    %10 = vsyncpa [#allocation4], 0
    %s11 = scalar_lea.sflag [#allocation4], 1
    %12 = vsyncpa %s11, 0
    loop: start=0, step=1, limit=4
    $region2: #{tpu_custom_call.1} parent=1 // loop_pre_header
      _
    $region3: #{tpu_custom_call.1} parent=1 // loop_header
      %s14 = sphi 0, %s18
      %p15 = scmp.ge.s32.totalorder %s14, 4
      %s24 = sphi 0, %s26
      %s27 = sphi 0, %s24
      %s28 = sphi 0, %s27
      %s44 = sphi 0, %s28
      %s50 = sphi 0, %s52
      %s53 = sphi 0, %s50
      %s54 = sphi 0, %s53
      %s70 = sphi 0, %s54
      %s74 = sphi 0, %s74
      %s76 = sphi 0, %s74
      %s77 = sphi 0, %s76
      %s91 = sphi 0, %s77
      %s95 = sphi 0, %s95
      %s97 = sphi 0, %s95
      %s98 = sphi 0, %s97
      %s112 = sphi 0, %s98
      %s118 = sphi 0, %s120
      %s121 = sphi 0, %s118
      %s122 = sphi 0, %s121
      %s138 = sphi 0, %s122
    $region4: #{tpu_custom_call.1} parent=1 // loop_header_branch
      %17 = sbr.rel (%p15) target = $region8
    $region5: #{tpu_custom_call.1} parent=1 // loop_body
      %s19 = ssub.s32 %s14, 1
      %s20 = ssub.s32 %s14, 2
      %s21 = sadd.s32 %s14, 1
      %s22 = ssub.s32 %s14, %s21
      %p23 = scmp.eq.s32.totalorder %s22, 0
      %s25 = sadd.s32 %s24, 1
      %s26 = scalar_select %p23, %s24, %s25
      %p29 = pneg %p23
      %p30 = scmp.eq.s32.totalorder %s14, 1
      %p31 = por %p29, %p30
      %p32 = scmp.ne.s32.totalorder %s24, %s27
      %p33 = scmp.eq.s32.totalorder %s14, 0
      %p34 = por %p32, %p33
      %p35 = scmp.ne.s32.totalorder %s24, %s27
      %p36 = scmp.eq.s32.totalorder %s19, 1
      %p37 = por %p35, %p36
      %p38 = scmp.ne.s32.totalorder %s27, %s28
      %p39 = scmp.eq.s32.totalorder %s19, 0
      %p40 = por %p38, %p39
      %p41 = scmp.ne.s32.totalorder %s27, %s28
      %p42 = scmp.eq.s32.totalorder %s20, 1
      %p43 = por %p41, %p42
      %p45 = scmp.ne.s32.totalorder %s28, %s44
      %p46 = scmp.eq.s32.totalorder %s20, 0
      %p47 = por %p45, %p46
      %s48 = ssub.s32 %s14, %s21
      %p49 = scmp.eq.s32.totalorder %s48, 0
      %s51 = sadd.s32 %s50, 1
      %s52 = scalar_select %p49, %s50, %s51
      %p55 = pneg %p49
      %p56 = scmp.eq.s32.totalorder %s14, 1
      %p57 = por %p55, %p56
      %p58 = scmp.ne.s32.totalorder %s50, %s53
      %p59 = scmp.eq.s32.totalorder %s14, 0
      %p60 = por %p58, %p59
      %p61 = scmp.ne.s32.totalorder %s50, %s53
      %p62 = scmp.eq.s32.totalorder %s19, 1
      %p63 = por %p61, %p62
      %p64 = scmp.ne.s32.totalorder %s53, %s54
      %p65 = scmp.eq.s32.totalorder %s19, 0
      %p66 = por %p64, %p65
      %p67 = scmp.ne.s32.totalorder %s53, %s54
      %p68 = scmp.eq.s32.totalorder %s20, 1
      %p69 = por %p67, %p68
      %p71 = scmp.ne.s32.totalorder %s54, %s70
      %p72 = scmp.eq.s32.totalorder %s20, 0
      %p73 = por %p71, %p72
      %s75 = sadd.s32 %s74, 1
      %p78 = scmp.eq.s32.totalorder %s14, 1
      %p79 = scmp.ne.s32.totalorder %s74, %s76
      %p80 = scmp.eq.s32.totalorder %s14, 0
      %p81 = por %p79, %p80
      %p82 = scmp.ne.s32.totalorder %s74, %s76
      %p83 = scmp.eq.s32.totalorder %s19, 1
      %p84 = por %p82, %p83
      %p85 = scmp.ne.s32.totalorder %s76, %s77
      %p86 = scmp.eq.s32.totalorder %s19, 0
      %p87 = por %p85, %p86
      %p88 = scmp.ne.s32.totalorder %s76, %s77
      %p89 = scmp.eq.s32.totalorder %s20, 1
      %p90 = por %p88, %p89
      %p92 = scmp.ne.s32.totalorder %s77, %s91
      %p93 = scmp.eq.s32.totalorder %s20, 0
      %p94 = por %p92, %p93
      %s96 = sadd.s32 %s95, 1
      %p99 = scmp.eq.s32.totalorder %s14, 1
      %p100 = scmp.ne.s32.totalorder %s95, %s97
      %p101 = scmp.eq.s32.totalorder %s14, 0
      %p102 = por %p100, %p101
      %p103 = scmp.ne.s32.totalorder %s95, %s97
      %p104 = scmp.eq.s32.totalorder %s19, 1
      %p105 = por %p103, %p104
      %p106 = scmp.ne.s32.totalorder %s97, %s98
      %p107 = scmp.eq.s32.totalorder %s19, 0
      %p108 = por %p106, %p107
      %p109 = scmp.ne.s32.totalorder %s97, %s98
      %p110 = scmp.eq.s32.totalorder %s20, 1
      %p111 = por %p109, %p110
      %p113 = scmp.ne.s32.totalorder %s98, %s112
      %p114 = scmp.eq.s32.totalorder %s20, 0
      %p115 = por %p113, %p114
      %s116 = ssub.s32 %s14, %s21
      %p117 = scmp.eq.s32.totalorder %s116, 0
      %s119 = sadd.s32 %s118, 1
      %s120 = scalar_select %p117, %s118, %s119
      %p123 = pneg %p117
      %p124 = scmp.eq.s32.totalorder %s14, 1
      %p125 = por %p123, %p124
      %p126 = scmp.ne.s32.totalorder %s118, %s121
      %p127 = scmp.eq.s32.totalorder %s14, 0
      %p128 = por %p126, %p127
      %p129 = scmp.ne.s32.totalorder %s118, %s121
      %p130 = scmp.eq.s32.totalorder %s19, 1
      %p131 = por %p129, %p130
      %p132 = scmp.ne.s32.totalorder %s121, %s122
      %p133 = scmp.eq.s32.totalorder %s19, 0
      %p134 = por %p132, %p133
      %p135 = scmp.ne.s32.totalorder %s121, %s122
      %p136 = scmp.eq.s32.totalorder %s20, 1
      %p137 = por %p135, %p136
      %p139 = scmp.ne.s32.totalorder %s122, %s138
      %p140 = scmp.eq.s32.totalorder %s20, 0
      %p141 = por %p139, %p140
      %p142 = scmp.le.s32.totalorder 1, %s14
      %p143 = scmp.lt.s32.totalorder %s14, 3
      %p144 = pnand %p142, %p143
      %p145 = pneg %p144
      // Predicated region
      $region9: #{tpu_custom_call.1} parent=5 // pred_check
        _
      $region10: #{tpu_custom_call.1} parent=5 // pred_check_branch
        %147 = sbr.rel (%p144) target = $region12
      $region11: #{tpu_custom_call.1} parent=5 // pred_region
        %s148 = ssub.s32 %s14, 1
        // Predicated region
        $region13: #{tpu_custom_call.1} parent=11 // pred_check
          %p149 = pneg %p87
        $region14: #{tpu_custom_call.1} parent=11 // pred_check_branch
          %151 = sbr.rel (%p149) target = $region16
        $region15: #{tpu_custom_call.1} parent=11 // pred_region
          %s153 = ssub.s32 512, 512
          %154 = vsyncadd [#allocation3], %s153
          %s155 = sshll.u32 [#allocation2], 4
          %s156 = int_to_ptr.vmem [resolvable:$true] %s155
          %161 = dma.hbm_to_vmem [thread:$0]  %s2, 512, %s156, [#allocation3], 128, 128, 8
        $region16: #{tpu_custom_call.1} parent=11 // pred_fallthru
          _
        // Predicated region
        $region17: #{tpu_custom_call.1} parent=11 // pred_check
          %p162 = pneg %p108
        $region18: #{tpu_custom_call.1} parent=11 // pred_check_branch
          %164 = sbr.rel (%p162) target = $region20
        $region19: #{tpu_custom_call.1} parent=11 // pred_region
          _
        $region20: #{tpu_custom_call.1} parent=11 // pred_fallthru
          _
      $region12: #{tpu_custom_call.1} parent=5 // pred_fallthru
        _
      %p165 = scmp.lt.s32.totalorder %s14, 2
      // Predicated region
      $region21: #{tpu_custom_call.1} parent=5 // pred_check
        %p166 = pneg %p165
      $region22: #{tpu_custom_call.1} parent=5 // pred_check_branch
        %168 = sbr.rel (%p166) target = $region24
      $region23: #{tpu_custom_call.1} parent=5 // pred_region
        // Predicated region
        $region25: #{tpu_custom_call.1} parent=23 // pred_check
          %p169 = pneg %p34
        $region26: #{tpu_custom_call.1} parent=23 // pred_check_branch
          %171 = sbr.rel (%p169) target = $region28
        $region27: #{tpu_custom_call.1} parent=23 // pred_region
          %p172 = scmp.lt.s32.totalorder %s14, 1
          %s173 = scalar_select %p172, %s14, 1
          %s174 = smul.addr %s173, 8
          %s175 = scalar_lea.vmem %s0, %s174
        $region28: #{tpu_custom_call.1} parent=23 // pred_fallthru
          _
        // Predicated region
        $region29: #{tpu_custom_call.1} parent=23 // pred_check
          %p176 = pneg %p60
        $region30: #{tpu_custom_call.1} parent=23 // pred_check_branch
          %178 = sbr.rel (%p176) target = $region32
        $region31: #{tpu_custom_call.1} parent=23 // pred_region
          %p179 = scmp.lt.s32.totalorder %s14, 1
          %s180 = scalar_select %p179, %s14, 1
          %s181 = smul.addr %s180, 8
          %s182 = scalar_lea.vmem %s1, %s181
        $region32: #{tpu_custom_call.1} parent=23 // pred_fallthru
          _
      $region24: #{tpu_custom_call.1} parent=5 // pred_fallthru
        _
      %p183 = scmp.le.s32.totalorder 1, %s14
      %p184 = scmp.lt.s32.totalorder %s14, 3
      %p185 = pnand %p183, %p184
      %p186 = pneg %p185
      // Predicated region
      $region33: #{tpu_custom_call.1} parent=5 // pred_check
        _
      $region34: #{tpu_custom_call.1} parent=5 // pred_check_branch
        %188 = sbr.rel (%p185) target = $region36
      $region35: #{tpu_custom_call.1} parent=5 // pred_region
        %s189 = ssub.s32 %s14, 1
        // Predicated region
        $region37: #{tpu_custom_call.1} parent=35 // pred_check
          %p190 = pneg %p87
        $region38: #{tpu_custom_call.1} parent=35 // pred_check_branch
          %192 = sbr.rel (%p190) target = $region40
        $region39: #{tpu_custom_call.1} parent=35 // pred_region
          %193 = dma.done [#allocation3], 512
        $region40: #{tpu_custom_call.1} parent=35 // pred_fallthru
          _
        %p194 = scmp.lt.s32.totalorder %s19, 1
        %s195 = scalar_select %p194, %s19, 1
        %s196 = smul.addr %s195, 8
        %s197 = scalar_lea.vmem %s0, %s196
        %p198 = pneg %p40
        %p199 = pneg %p37
        %p200 = scmp.lt.s32.totalorder %s19, 1
        %s201 = scalar_select %p200, %s19, 1
        %s202 = smul.addr %s201, 8
        %s203 = scalar_lea.vmem %s1, %s202
        %p204 = pneg %p66
        %p205 = pneg %p63
        %p206 = pneg %p87
        %p207 = pneg %p84
        %p208 = pneg %p108
        %p209 = pneg %p105
        %p210 = pneg %p134
        %p211 = pneg %p131
        %s212 = sand.u32 %s121, 1
        %s213 = scalar_lea.sflag [#allocation4], %s212
        %s214 = sand.u32 %s121, 1
        %s215 = smul.addr %s214, 8
        %s216 = scalar_lea.vmem [#allocation5], %s215
        %p217 = scmp.lt.s32.totalorder %s19, 1
        %s218 = scalar_select %p217, %s19, 1
        %s219 = smul.addr %s218, 8
        %s220 = scalar_lea.vmem %s0, %s219
        %p221 = scmp.lt.s32.totalorder %s19, 1
        %s222 = scalar_select %p221, %s19, 1
        %s223 = smul.addr %s222, 8
        %s224 = scalar_lea.vmem %s1, %s223
        %v225 = vld [vmem:[%s220] sm:$0xff]
        %v226 = vand.u32 2147483647, %v225
        %v227 = vsub.f32 0.0, %v226
        %v228 = vmul.f32 %v227, 1.442695
        %v229 = vpow.pop %v228
        %v230 = vsub.f32 0.0, %v225
        %v231 = vmax.f32 %v230, 0.0
        %v232 = vadd.f32 %v229, 1.0
        %v233 = vlog2.pop %v232
        %v234 = vmul.f32 %v233, 0.6931472
        %v235 = vmul.f32 -0.5, %v229
        %v236 = vadd.f32 %v235, 1.0
        %v237 = vmul.f32 %v236, %v229
        %v238 = vand.u32 2147483647, %v229
        %vm239 = vcmp.lt.f32.partialorder %v238, 0.0004427343
        %v240 = vsel %vm239, %v237, %v234
        %v241 = vadd.f32 %v231, %v240
        %v242 = vadd.f32 %v241, %v225
        %vm243 = vcmp.ge.f32.partialorder %v225, 0.0
        %v244 = vsel %vm243, 1.0, %v229
        %v245 = vadd.f32 %v229, 1.0
        %v246 = vrcp.pop %v245
        %v247 = vmul.f32 %v244, %v246
        %v248 = vsub.f32 1.0, %v247
        %v249 = vmul.f32 %v248, %v248
        %v250 = vmul.f32 %v249, 0.25
        %v251 = vmul.f32 %v250, %v241
        %v252 = vmul.f32 %v247, %v247
        %v253 = vmul.f32 %v252, 0.75
        %v254 = vmul.f32 %v253, %v242
        %v255 = vsub.f32 %v251, %v254
        %v256 = vld [vmem:[#allocation2] sm:$0xff]
        %v257 = vld [vmem:[#allocation2 + $0x8] sm:$0xff]
        %v258 = vld [vmem:[#allocation2 + $0x10] sm:$0xff]
        %v259 = vld [vmem:[#allocation2 + $0x18] sm:$0xff]
        %vm260 = vcmask 261120
        %v262 = vsel %vm260, %v255, 0
        %264 = vmatprep.subr.mxu0 0.0
        %265 = vmatpush1.msra.mxu0 %v256
        %266 = vmatprep.subr.mxu0 0.0
        %267 = vmatpush1.msra.mxu0 %v257
        %268 = vmatprep.subr.mxu0 0.0
        %269 = vmatpush1.msra.mxu0 %v258
        %270 = vmatprep.subr.mxu0 0.0
        %271 = vmatpush1.msra.mxu0 %v259
        %272 = vmatprep.subr.mxu0 0.0
        %273 = vmatpush1.msra.mxu0 0.0
        %274 = vmatprep.subr.mxu0 0.0
        %275 = vmatpush1.msra.mxu0 0.0
        %276 = vmatprep.subr.mxu0 0.0
        %277 = vmatpush1.msra.mxu0 0.0
        %278 = vmatprep.subr.mxu0 0.0
        %279 = vmatpush1.msra.mxu0 0.0
        %280 = vmatprep.subr.mxu0 0.0
        %281 = vmatpush1.msra.mxu0 0.0
        %282 = vmatprep.subr.mxu0 0.0
        %283 = vmatpush1.msra.mxu0 0.0
        %284 = vmatprep.subr.mxu0 0.0
        %285 = vmatpush1.msra.mxu0 0.0
        %286 = vmatprep.subr.mxu0 0.0
        %287 = vmatpush1.msra.mxu0 0.0
        %288 = vmatprep.subr.mxu0 0.0
        %289 = vmatpush1.msra.mxu0 0.0
        %290 = vmatprep.subr.mxu0 0.0
        %291 = vmatpush1.msra.mxu0 0.0
        %292 = vmatprep.subr.mxu0 0.0
        %293 = vmatpush1.msra.mxu0 0.0
        %294 = vmatprep.subr.mxu0 0.0
        %295 = vmatpush1.msra.mxu0 0.0
        %296 = vmatprep.subr.mxu0 0.0
        %297 = vmatpush1.msra.mxu0 0.0
        %298 = vmatprep.subr.mxu0 0.0
        %299 = vmatpush1.msra.mxu0 0.0
        %300 = vmatprep.subr.mxu0 0.0
        %301 = vmatpush1.msra.mxu0 0.0
        %302 = vmatprep.subr.mxu0 0.0
        %303 = vmatpush1.msra.mxu0 0.0
        %304 = vmatprep.subr.mxu0 0.0
        %305 = vmatpush1.msra.mxu0 0.0
        %306 = vmatprep.subr.mxu0 0.0
        %307 = vmatpush1.msra.mxu0 0.0
        %308 = vmatprep.subr.mxu0 0.0
        %309 = vmatpush1.msra.mxu0 0.0
        %310 = vmatprep.subr.mxu0 0.0
        %311 = vmatpush1.msra.mxu0 0.0
        %312 = vmatprep.subr.mxu0 0.0
        %313 = vmatpush1.msra.mxu0 0.0
        %314 = vmatprep.subr.mxu0 0.0
        %315 = vmatpush1.msra.mxu0 0.0
        %316 = vmatprep.subr.mxu0 0.0
        %317 = vmatpush1.msra.mxu0 0.0
        %318 = vmatprep.subr.mxu0 0.0
        %319 = vmatpush1.msra.mxu0 0.0
        %320 = vmatprep.subr.mxu0 0.0
        %321 = vmatpush1.msra.mxu0 0.0
        %322 = vmatprep.subr.mxu0 0.0
        %323 = vmatpush1.msra.mxu0 0.0
        %324 = vmatprep.subr.mxu0 0.0
        %325 = vmatpush1.msra.mxu0 0.0
        %326 = vmatprep.subr.mxu0 0.0
        %327 = vmatpush1.msra.mxu0 0.0
        %328 = vmatprep.mubr.f32.mxu0 0.0
        %329 = vmatmul.mubr.f32.gmra.mrb[0].mxu0 %v262
        %v330 = vpop.f32.mrb[0].mxu0
        %v331 = vadd.f32 0.0, %v330
        %v332 = vpop.f32.mrb[0].mxu0
        %333 = vdwg.mxu0
        %v334 = vld [vmem:[%s224] sm:$0xff]
        %v335 = vld [vmem:[%s3] sm:$0xf]
        %337 = vset.pattern.permute.xlu0 0
        %338 = vperm.xlu0 %337, %v334
        %v339 = vpop.permute.xlu0 %338
        %v341 = vlaneseq
        %v342 = vshrl.u32 %v341, 7
        %v343 = vsub.s32 0, %v342
        %v344 = vrot.slane %v335, %v343
        %v345 = vsub.f32 %v339, %v344
        %346 = vset.pattern.permute.xlu0 1
        %347 = vperm.xlu0 %346, %v334
        %v348 = vpop.permute.xlu0 %347
        %v350 = vlaneseq
        %v351 = vshrl.u32 %v350, 7
        %v352 = vsub.s32 1, %v351
        %v353 = vrot.slane %v335, %v352
        %v354 = vsub.f32 %v348, %v353
        %355 = vset.pattern.permute.xlu0 2
        %356 = vperm.xlu0 %355, %v334
        %v357 = vpop.permute.xlu0 %356
        %v359 = vlaneseq
        %v360 = vshrl.u32 %v359, 7
        %v361 = vsub.s32 2, %v360
        %v362 = vrot.slane %v335, %v361
        %v363 = vsub.f32 %v357, %v362
        %364 = vset.pattern.permute.xlu0 3
        %365 = vperm.xlu0 %364, %v334
        %v366 = vpop.permute.xlu0 %365
        %v368 = vlaneseq
        %v369 = vshrl.u32 %v368, 7
        %v370 = vsub.s32 3, %v369
        %v371 = vrot.slane %v335, %v370
        %v372 = vsub.f32 %v366, %v371
        %v373 = vmul.f32 %v345, %v345
        %v374 = vmul.f32 %v354, %v354
        %v375 = vadd.f32 %v373, %v374
        %v376 = vmul.f32 %v363, %v363
        %v377 = vadd.f32 %v375, %v376
        %v378 = vmul.f32 %v372, %v372
        %v379 = vadd.f32 %v377, %v378
        %v380 = vrsqrt.pop %v379
        %v381 = vmul.f32 %v379, %v380
        %vm382 = vcmp.eq.f32.partialorder %v379, inf
        %v383 = vsel %vm382, %v379, %v381
        %vm384 = vcmp.eq.f32.partialorder %v379, 0.0
        %v385 = vand.u32 %v379, 2147483648
        %v386 = vsel %vm384, %v385, %v383
        %v387 = vmul.f32 %v331, 2.0
        %v388 = vmul.f32 %v386, 0.25
        %v389 = vadd.f32 %v387, %v388
        %390 = vst [vmem:[%s216] sm:$0xff] %v389
        %s391 = sand.u32 %s121, 1
        %s392 = scalar_lea.sflag [#allocation4], %s391
        %s393 = sand.u32 %s121, 1
        %s394 = smul.addr %s393, 8
        %s395 = scalar_lea.vmem [#allocation5], %s394
        // Predicated region
        $region41: #{tpu_custom_call.1} parent=35 // pred_check
          %p396 = pneg %p131
        $region42: #{tpu_custom_call.1} parent=35 // pred_check_branch
          %398 = sbr.rel (%p396) target = $region44
        $region43: #{tpu_custom_call.1} parent=35 // pred_region
          %s400 = ssub.s32 128, 128
          %401 = vsyncadd %s392, %s400
          %s402 = smul.addr %s19, 128
          %s403 = scalar_lea.hbm %s4, %s402
          %s405 = sshll.u32 %s395, 4
          %s406 = int_to_ptr.vmem [resolvable:$true] %s405
          %408 = dma.vmem_to_hbm [thread:$0]  %s406, 128, %s403, %s392
        $region44: #{tpu_custom_call.1} parent=35 // pred_fallthru
          _
      $region36: #{tpu_custom_call.1} parent=5 // pred_fallthru
        _
      %p409 = scmp.le.s32.totalorder 2, %s14
      // Predicated region
      $region45: #{tpu_custom_call.1} parent=5 // pred_check
        %p410 = pneg %p409
      $region46: #{tpu_custom_call.1} parent=5 // pred_check_branch
        %412 = sbr.rel (%p410) target = $region48
      $region47: #{tpu_custom_call.1} parent=5 // pred_region
        %s413 = ssub.s32 %s14, 2
        // Predicated region
        $region49: #{tpu_custom_call.1} parent=47 // pred_check
          %p414 = pneg %p137
        $region50: #{tpu_custom_call.1} parent=47 // pred_check_branch
          %416 = sbr.rel (%p414) target = $region52
        $region51: #{tpu_custom_call.1} parent=47 // pred_region
          %s417 = sand.u32 %s122, 1
          %s418 = scalar_lea.sflag [#allocation4], %s417
          %s419 = sand.u32 %s122, 1
          %s420 = smul.addr %s419, 8
          %s421 = scalar_lea.vmem [#allocation5], %s420
          %422 = dma.done %s418, 128
        $region52: #{tpu_custom_call.1} parent=47 // pred_fallthru
          _
      $region48: #{tpu_custom_call.1} parent=5 // pred_fallthru
        _
    $region6: #{tpu_custom_call.1} parent=1 // loop_footer
      %s18 = sadd.s32 1, %s14
    $region7: #{tpu_custom_call.1} parent=1 // loop_footer_branch
      %13 = sbr.rel target = $region3
    $region8: #{tpu_custom_call.1} parent=1 // loop_exit
      _
    %423 = vsyncpa [#allocation3], 1
    %s424 = scalar_lea.sflag [#allocation3], 1
    %425 = vsyncpa %s424, 1
    %426 = vsyncpa [#allocation4], 1
    %s427 = scalar_lea.sflag [#allocation4], 1
    %428 = vsyncpa %s427, 1

</llo_original>
